<compile_context>
chip_gen: v7x
topology: tpu7x:2x2x1
jax: 0.10.0
libtpu: 0.0.40
codegen_flags: <defaults>
</compile_context>

<pallas_src>
import jax
import jax.numpy as jnp
from jax.experimental import pallas as pl
from jax.experimental.pallas import tpu as pltpu

LATENT = 64   # encoder output width (flatten -> Linear(64, 10) contract)
N_OUT = 10    # supervised head width
TB_MAX = 2048  # max batch-tile rows (multiple of 8)


def _round_up(n, m):
    return ((n + m - 1) // m) * m


def _lastlayer_kernel(x_ref, w1_ref, b1_ref, w2_ref, b2_ref, w3_ref, b3_ref,
                      logits_ref, enc_ref):
    """Fused encoder (Linear+ReLU, Linear+ReLU) + supervised Linear(64, 10).

    Per grid step (batch tile of TB rows):
      x_ref      : (TB, D_in)   input tile (streamed)
      w1_ref     : (D_in, H)    encoder layer-1 weight (transposed, VMEM-resident)
      b1_ref     : (1, H)       encoder layer-1 bias
      w2_ref     : (H, 64)      encoder layer-2 weight (transposed, resident)
      b2_ref     : (1, 64)      encoder layer-2 bias
      w3_ref     : (64, 10)     supervised head weight (transposed, resident)
      b3_ref     : (1, 10)      supervised head bias
      logits_ref : (TB, 10)     supervised logits (module's return value)
      enc_ref    : (TB, 64)     encoder latent (module's `autoencoder_output`)
    """
    x = x_ref[...]

    # encoder layer 1: Linear + ReLU  (MXU matmul, f32 accumulate)
    h = jnp.dot(x, w1_ref[...], preferred_element_type=jnp.float32)
    h = jnp.maximum(h + b1_ref[...], 0.0)

    # encoder layer 2: Linear + ReLU -> 64-dim latent (the stored encoder output)
    z = jnp.dot(h, w2_ref[...], preferred_element_type=jnp.float32)
    z = jnp.maximum(z + b2_ref[...], 0.0)
    enc_ref[...] = z.astype(enc_ref.dtype)

    # flatten is a no-op (already (TB, 64)); supervised head Linear(64, 10)
    logits = jnp.dot(z, w3_ref[...], preferred_element_type=jnp.float32)
    logits_ref[...] = (logits + b3_ref[...]).astype(logits_ref.dtype)


@jax.jit
def last_layer_forward(x, params):
    """Forward pass. Returns (logits (B, 10), autoencoder_output (B, 64))."""
    w1, b1, w2, b2, w3, b3 = params
    B, D_in = x.shape
    H = w1.shape[1]

    # --- batch tiling ---------------------------------------------------
    # Pad the batch only to the 8-row sublane boundary, then pick TB so it
    # divides B_pad exactly.  Keep the number of tiles even when >1 so the
    # "parallel" batch axis balances across v7x's two TensorCores.
    B8 = _round_up(B, 8)
    num_tiles = max(1, pl.cdiv(B8, TB_MAX))
    if num_tiles > 1 and num_tiles % 2 == 1:
        num_tiles += 1
    TB = _round_up(pl.cdiv(B8, num_tiles), 8)
    B_pad = TB * num_tiles
    if B_pad != B:
        x = jnp.pad(x, ((0, B_pad - B), (0, 0)))

    grid = (num_tiles,)

    flops = 2 * B_pad * (D_in * H + H * LATENT + LATENT * N_OUT)
    bytes_accessed = 4 * (
        B_pad * D_in                         # x stream in
        + B_pad * (LATENT + N_OUT)           # enc + logits stream out
        + D_in * H + H + H * LATENT + LATENT + LATENT * N_OUT + N_OUT
    )

    logits, enc = pl.pallas_call(
        _lastlayer_kernel,
        out_shape=(
            jax.ShapeDtypeStruct((B_pad, N_OUT), jnp.float32),
            jax.ShapeDtypeStruct((B_pad, LATENT), jnp.float32),
        ),
        grid=grid,
        in_specs=[
            pl.BlockSpec((TB, D_in), lambda i: (i, 0)),        # x: streamed
            pl.BlockSpec((D_in, H), lambda i: (0, 0)),         # w1: resident
            pl.BlockSpec((1, H), lambda i: (0, 0)),            # b1: resident
            pl.BlockSpec((H, LATENT), lambda i: (0, 0)),       # w2: resident
            pl.BlockSpec((1, LATENT), lambda i: (0, 0)),       # b2: resident
            pl.BlockSpec((LATENT, N_OUT), lambda i: (0, 0)),   # w3: resident
            pl.BlockSpec((1, N_OUT), lambda i: (0, 0)),        # b3: resident
        ],
        out_specs=(
            pl.BlockSpec((TB, N_OUT), lambda i: (i, 0)),       # logits
            pl.BlockSpec((TB, LATENT), lambda i: (i, 0)),      # encoder latent
        ),
        compiler_params=pltpu.CompilerParams(
            dimension_semantics=("parallel",),
            vmem_limit_bytes=64 << 20,
        ),
        cost_estimate=pl.CostEstimate(
            flops=flops, bytes_accessed=bytes_accessed, transcendentals=0),
    )(x, w1, b1, w2, b2, w3, b3)

    if B_pad != B:
        logits = logits[:B]
        enc = enc[:B]
    return logits, enc


def init_params(key, d_in=32, hidden=128, latent=LATENT, n_out=N_OUT):
    """Deterministic PyTorch-style (uniform +/- 1/sqrt(fan_in)) init.

    Weights are stored transposed, i.e. shape (fan_in, fan_out).
    """
    ks = jax.random.split(key, 6)

    def lin(kw, kb, fan_in, fan_out):
        bound = 1.0 / jnp.sqrt(fan_in)
        w = jax.random.uniform(kw, (fan_in, fan_out), jnp.float32, -bound, bound)
        b = jax.random.uniform(kb, (1, fan_out), jnp.float32, -bound, bound)
        return w, b

    w1, b1 = lin(ks[0], ks[1], d_in, hidden)     # encoder Linear(d_in, hidden)
    w2, b2 = lin(ks[2], ks[3], hidden, latent)   # encoder Linear(hidden, 64)
    w3, b3 = lin(ks[4], ks[5], latent, n_out)    # supervised Linear(64, 10)
    return (w1, b1, w2, b2, w3, b3)


def _reference_forward(x, params):
    """Pure-JAX reference for correctness checking."""
    w1, b1, w2, b2, w3, b3 = params
    h = jnp.maximum(x @ w1 + b1, 0.0)
    z = jnp.maximum(h @ w2 + b2, 0.0)
    return z @ w3 + b3, z


if __name__ == "__main__":
    key = jax.random.PRNGKey(0)
    k_x, k_p = jax.random.split(key)

    B, D_IN = 8, 32
    x = jax.random.normal(k_x, (B, D_IN), jnp.float32)
    params = init_params(k_p, d_in=D_IN)

    logits, enc = last_layer_forward(x, params)
    jax.block_until_ready((logits, enc))

    ref_logits, ref_enc = _reference_forward(x, params)
    assert logits.shape == (B, 10) and enc.shape == (B, 64)
    assert jnp.allclose(logits, ref_logits, atol=1e-5, rtol=1e-5)
    assert jnp.allclose(enc, ref_enc, atol=1e-5, rtol=1e-5)

    print("KERNEL_OK")
</pallas_src>

<mosaic_0001>
module attributes {stable_mosaic.version = 11 : i64} {
  func.func @_lastlayer_kernel(%arg0: i32, %arg1: memref<8x32xf32, #tpu.memory_space<vmem>>, %arg2: memref<32x128xf32, #tpu.memory_space<vmem>>, %arg3: memref<1x128xf32, #tpu.memory_space<vmem>>, %arg4: memref<128x64xf32, #tpu.memory_space<vmem>>, %arg5: memref<1x64xf32, #tpu.memory_space<vmem>>, %arg6: memref<64x10xf32, #tpu.memory_space<vmem>>, %arg7: memref<1x10xf32, #tpu.memory_space<vmem>>, %arg8: memref<8x10xf32, #tpu.memory_space<vmem>>, %arg9: memref<8x64xf32, #tpu.memory_space<vmem>>) attributes {dimension_semantics = [#tpu.dimension_semantics<parallel>], iteration_bounds = array<i64: 1>, scalar_prefetch = 0 : i64, scratch_operands = 0 : i64, tpu.core_type = #tpu.core_type<tc>, window_params = [{transform_indices = @transform_0, window_bounds = array<i64: 8, 32>}, {pipeline_mode = #tpu.pipeline_mode<synchronous>, transform_indices = @transform_1, window_bounds = array<i64: 32, 128>}, {pipeline_mode = #tpu.pipeline_mode<synchronous>, transform_indices = @transform_2, window_bounds = array<i64: 1, 128>}, {pipeline_mode = #tpu.pipeline_mode<synchronous>, transform_indices = @transform_3, window_bounds = array<i64: 128, 64>}, {pipeline_mode = #tpu.pipeline_mode<synchronous>, transform_indices = @transform_4, window_bounds = array<i64: 1, 64>}, {pipeline_mode = #tpu.pipeline_mode<synchronous>, transform_indices = @transform_5, window_bounds = array<i64: 64, 10>}, {pipeline_mode = #tpu.pipeline_mode<synchronous>, transform_indices = @transform_6, window_bounds = array<i64: 1, 10>}, {transform_indices = @transform_7, window_bounds = array<i64: 8, 10>}, {transform_indices = @transform_8, window_bounds = array<i64: 8, 64>}]} {
    %c0 = arith.constant 0 : index
    %c0_0 = arith.constant 0 : index
    %0 = vector.load %arg1[%c0, %c0_0] : memref<8x32xf32, #tpu.memory_space<vmem>>, vector<8x32xf32>
    %c0_1 = arith.constant 0 : index
    %c0_2 = arith.constant 0 : index
    %1 = vector.load %arg2[%c0_1, %c0_2] : memref<32x128xf32, #tpu.memory_space<vmem>>, vector<32x128xf32>
    %cst = arith.constant dense<0.000000e+00> : vector<8x128xf32>
    %2 = tpu.matmul %0, %1, %cst {dimension_numbers = #tpu.dot_dimension_numbers<[1], [0], [0], [1], [0, 0, 1, 1], [], []>} : vector<8x32xf32>, vector<32x128xf32>, vector<8x128xf32> -> vector<8x128xf32>
    %c0_3 = arith.constant 0 : index
    %c0_4 = arith.constant 0 : index
    %3 = vector.load %arg3[%c0_3, %c0_4] : memref<1x128xf32, #tpu.memory_space<vmem>>, vector<1x128xf32>
    %4 = vector.broadcast %3 : vector<1x128xf32> to vector<8x128xf32>
    %5 = arith.addf %2, %4 : vector<8x128xf32>
    %cst_5 = arith.constant 0.000000e+00 : f32
    %6 = vector.broadcast %cst_5 : f32 to vector<8x128xf32>
    %7 = arith.maximumf %5, %6 : vector<8x128xf32>
    %c0_6 = arith.constant 0 : index
    %c0_7 = arith.constant 0 : index
    %8 = vector.load %arg4[%c0_6, %c0_7] : memref<128x64xf32, #tpu.memory_space<vmem>>, vector<128x64xf32>
    %cst_8 = arith.constant dense<0.000000e+00> : vector<8x64xf32>
    %9 = tpu.matmul %7, %8, %cst_8 {dimension_numbers = #tpu.dot_dimension_numbers<[1], [0], [0], [1], [0, 0, 1, 1], [], []>} : vector<8x128xf32>, vector<128x64xf32>, vector<8x64xf32> -> vector<8x64xf32>
    %c0_9 = arith.constant 0 : index
    %c0_10 = arith.constant 0 : index
    %10 = vector.load %arg5[%c0_9, %c0_10] : memref<1x64xf32, #tpu.memory_space<vmem>>, vector<1x64xf32>
    %11 = vector.broadcast %10 : vector<1x64xf32> to vector<8x64xf32>
    %12 = arith.addf %9, %11 : vector<8x64xf32>
    %cst_11 = arith.constant 0.000000e+00 : f32
    %13 = vector.broadcast %cst_11 : f32 to vector<8x64xf32>
    %14 = arith.maximumf %12, %13 : vector<8x64xf32>
    %c0_12 = arith.constant 0 : index
    %c0_13 = arith.constant 0 : index
    %15 = vector.load %arg9[%c0_12, %c0_13] : memref<8x64xf32, #tpu.memory_space<vmem>>, vector<8x64xf32>
    tpu.vector_store %arg9[%c0_12, %c0_13], %14 {strides = array<i32>} : memref<8x64xf32, #tpu.memory_space<vmem>>, vector<8x64xf32>,
    %c0_14 = arith.constant 0 : index
    %c0_15 = arith.constant 0 : index
    %16 = vector.load %arg6[%c0_14, %c0_15] : memref<64x10xf32, #tpu.memory_space<vmem>>, vector<64x10xf32>
    %cst_16 = arith.constant dense<0.000000e+00> : vector<8x10xf32>
    %17 = tpu.matmul %14, %16, %cst_16 {dimension_numbers = #tpu.dot_dimension_numbers<[1], [0], [0], [1], [0, 0, 1, 1], [], []>} : vector<8x64xf32>, vector<64x10xf32>, vector<8x10xf32> -> vector<8x10xf32>
    %c0_17 = arith.constant 0 : index
    %c0_18 = arith.constant 0 : index
    %18 = vector.load %arg7[%c0_17, %c0_18] : memref<1x10xf32, #tpu.memory_space<vmem>>, vector<1x10xf32>
    %19 = vector.broadcast %18 : vector<1x10xf32> to vector<8x10xf32>
    %20 = arith.addf %17, %19 : vector<8x10xf32>
    %c0_19 = arith.constant 0 : index
    %c0_20 = arith.constant 0 : index
    %21 = vector.load %arg8[%c0_19, %c0_20] : memref<8x10xf32, #tpu.memory_space<vmem>>, vector<8x10xf32>
    tpu.vector_store %arg8[%c0_19, %c0_20], %20 {strides = array<i32>} : memref<8x10xf32, #tpu.memory_space<vmem>>, vector<8x10xf32>,
    return
  }
  func.func @transform_0(%arg0: i32) -> (i32, i32) {
    %c0_i32 = arith.constant 0 : i32
    %c0_i32_0 = arith.constant 0 : i32
    return %arg0, %c0_i32 : i32, i32
  }
  func.func @transform_1(%arg0: i32) -> (i32, i32) {
    %c0_i32 = arith.constant 0 : i32
    %c0_i32_0 = arith.constant 0 : i32
    %c0_i32_1 = arith.constant 0 : i32
    return %c0_i32, %c0_i32_0 : i32, i32
  }
  func.func @transform_2(%arg0: i32) -> (i32, i32) {
    %c0_i32 = arith.constant 0 : i32
    %c0_i32_0 = arith.constant 0 : i32
    %c0_i32_1 = arith.constant 0 : i32
    return %c0_i32, %c0_i32_0 : i32, i32
  }
  func.func @transform_3(%arg0: i32) -> (i32, i32) {
    %c0_i32 = arith.constant 0 : i32
    %c0_i32_0 = arith.constant 0 : i32
    %c0_i32_1 = arith.constant 0 : i32
    return %c0_i32, %c0_i32_0 : i32, i32
  }
  func.func @transform_4(%arg0: i32) -> (i32, i32) {
    %c0_i32 = arith.constant 0 : i32
    %c0_i32_0 = arith.constant 0 : i32
    %c0_i32_1 = arith.constant 0 : i32
    return %c0_i32, %c0_i32_0 : i32, i32
  }
  func.func @transform_5(%arg0: i32) -> (i32, i32) {
    %c0_i32 = arith.constant 0 : i32
    %c0_i32_0 = arith.constant 0 : i32
    %c0_i32_1 = arith.constant 0 : i32
    return %c0_i32, %c0_i32_0 : i32, i32
  }
  func.func @transform_6(%arg0: i32) -> (i32, i32) {
    %c0_i32 = arith.constant 0 : i32
    %c0_i32_0 = arith.constant 0 : i32
    %c0_i32_1 = arith.constant 0 : i32
    return %c0_i32, %c0_i32_0 : i32, i32
  }
  func.func @transform_7(%arg0: i32) -> (i32, i32) {
    %c0_i32 = arith.constant 0 : i32
    %c0_i32_0 = arith.constant 0 : i32
    return %arg0, %c0_i32 : i32, i32
  }
  func.func @transform_8(%arg0: i32) -> (i32, i32) {
    %c0_i32 = arith.constant 0 : i32
    %c0_i32_0 = arith.constant 0 : i32
    return %arg0, %c0_i32 : i32, i32
  }
}

</mosaic_0001>

<llo_original>
// kernel: last_layer_forward.1
$region0: #{last_layer_forward.1}
  #allocation0 [shape = 'u32[]', space=smem, size = 0x4, offset = 0x4, fixed_abs, tag = 'smem constant byte address 0x4 - core index']
  #allocation1 [shape = 'u32[144,128]{1,0:T(1,128)}', space=vmem, size = 0x12000, scoped, tag = 'internal scratch']
  %s0 = inlined_call_operand.hbm [shape: f32[8,32], index: 0, kind: input, shape index: {}]
  %s1 = inlined_call_operand.hbm [shape: f32[32,128], index: 1, kind: input, shape index: {}]
  %s2 = inlined_call_operand.hbm [shape: f32[1,128], index: 2, kind: input, shape index: {}]
  %s3 = inlined_call_operand.hbm [shape: f32[128,64], index: 3, kind: input, shape index: {}]
  %s4 = inlined_call_operand.hbm [shape: f32[1,64], index: 4, kind: input, shape index: {}]
  %s5 = inlined_call_operand.hbm [shape: f32[64,10], index: 5, kind: input, shape index: {}]
  %s6 = inlined_call_operand.hbm [shape: f32[1,10], index: 6, kind: input, shape index: {}]
  %s7 = inlined_call_operand.hbm [shape: f32[8,10], index: 7, kind: output, shape index: {0}]
  %s8 = inlined_call_operand.hbm [shape: f32[8,64], index: 8, kind: output, shape index: {1}]
  %9 = xla_tuple %s7, %s8
  %s10 = sld [smem:[#allocation0]]
  $region74: #{last_layer_forward.1} parent=0
    _
  %s12 = ssub.s32 1, %s10
  %s13 = scalar_select 0, %s12, %s10
  $region1: #{last_layer_forward.1} parent=0
    #allocation2 [shape = 'u8[4096]{0}', space=vmem, size = 0x1000, scoped, tag = 'input window, operand 0, single buffered']
    #allocation3 [shape = 's32[1]{0}', space=sflag, size = 0x4, scoped, tag = 'scoped memory for last_layer_forward.1']
    #allocation4 [shape = 's32[1]{0}', space=sflag, size = 0x4, scoped, tag = 'scoped memory for last_layer_forward.1']
    #allocation5 [shape = 'u8[16384]{0}', space=vmem, size = 0x4000, scoped, tag = 'input window, operand 1, single buffered']
    #allocation6 [shape = 's32[1]{0}', space=sflag, size = 0x4, scoped, tag = 'scoped memory for last_layer_forward.1']
    #allocation7 [shape = 'u8[512]{0}', space=vmem, size = 0x400, scoped, tag = 'input window, operand 2, single buffered']
    #allocation8 [shape = 'u8[65536]{0}', space=vmem, size = 0x10000, scoped, tag = 'input window, operand 3, single buffered']
    #allocation9 [shape = 's32[1]{0}', space=sflag, size = 0x4, scoped, tag = 'scoped memory for last_layer_forward.1']
    #allocation10 [shape = 'u8[512]{0}', space=vmem, size = 0x400, scoped, tag = 'input window, operand 4, single buffered']
    #allocation11 [shape = 'u8[32768]{0}', space=vmem, size = 0x8000, scoped, tag = 'input window, operand 5, single buffered']
    #allocation12 [shape = 's32[1]{0}', space=sflag, size = 0x4, scoped, tag = 'scoped memory for last_layer_forward.1']
    #allocation13 [shape = 'u8[512]{0}', space=vmem, size = 0x400, scoped, tag = 'input window, operand 6, single buffered']
    #allocation14 [shape = 'u8[4096]{0}', space=vmem, size = 0x1000, scoped, tag = 'output window, operand 0, single buffered']
    #allocation15 [shape = 'u8[4096]{0}', space=vmem, size = 0x1000, scoped, tag = 'output window, operand 1, single buffered']
    #allocation16 [shape = 's32[1]{0}', space=sflag, size = 0x4, scoped, tag = 'scoped memory for last_layer_forward.1']
    %14 = vsyncpa [#allocation3], 0
    %15 = vsyncpa [#allocation6], 0
    %16 = vsyncpa [#allocation9], 0
    %17 = vsyncpa [#allocation12], 0
    %18 = vsyncpa [#allocation4], 0
    %19 = vsyncpa [#allocation16], 0
    // Predicated region
    $region2: #{last_layer_forward.1} parent=1 // pred_check
      _
    $region3: #{last_layer_forward.1} parent=1 // pred_check_branch
      %21 = sbr.rel (0) target = $region5
    $region4: #{last_layer_forward.1} parent=1 // pred_region
      %s23 = ssub.s32 128, 128
      %24 = vsyncadd [#allocation3], %s23
      %s26 = sshll.u32 [#allocation2], 4
      %s27 = int_to_ptr.vmem [resolvable:$true] %s26
      %29 = dma.hbm_to_vmem [thread:$0]  %s0, 128, %s27, [#allocation3]
    $region5: #{last_layer_forward.1} parent=1 // pred_fallthru
      _
    // Predicated region
    $region6: #{last_layer_forward.1} parent=1 // pred_check
      _
    $region7: #{last_layer_forward.1} parent=1 // pred_check_branch
      %31 = sbr.rel (0) target = $region9
    $region8: #{last_layer_forward.1} parent=1 // pred_region
      %s33 = ssub.s32 512, 512
      %34 = vsyncadd [#allocation6], %s33
      %s35 = sshll.u32 [#allocation5], 4
      %s36 = int_to_ptr.vmem [resolvable:$true] %s35
      %41 = dma.hbm_to_vmem [thread:$0]  %s1, 512, %s36, [#allocation6], 128, 128, 8
    $region9: #{last_layer_forward.1} parent=1 // pred_fallthru
      _
    // Predicated region
    $region10: #{last_layer_forward.1} parent=1 // pred_check
      _
    $region11: #{last_layer_forward.1} parent=1 // pred_check_branch
      %43 = sbr.rel (0) target = $region13
    $region12: #{last_layer_forward.1} parent=1 // pred_region
      %s45 = ssub.s32 16, 16
      %46 = vsyncadd [#allocation6], %s45
      %s48 = sshll.u32 [#allocation7], 4
      %s49 = int_to_ptr.vmem [resolvable:$true] %s48
      %51 = dma.hbm_to_vmem [thread:$0]  %s2, 16, %s49, [#allocation6]
    $region13: #{last_layer_forward.1} parent=1 // pred_fallthru
      _
    // Predicated region
    $region14: #{last_layer_forward.1} parent=1 // pred_check
      _
    $region15: #{last_layer_forward.1} parent=1 // pred_check_branch
      %53 = sbr.rel (0) target = $region17
    $region16: #{last_layer_forward.1} parent=1 // pred_region
      %s55 = ssub.s32 2048, 2048
      %56 = vsyncadd [#allocation9], %s55
      %s57 = sshll.u32 [#allocation8], 4
      %s58 = int_to_ptr.vmem [resolvable:$true] %s57
      %63 = dma.hbm_to_vmem [thread:$0]  %s3, 2048, %s58, [#allocation9], 128, 128, 8
    $region17: #{last_layer_forward.1} parent=1 // pred_fallthru
      _
    // Predicated region
    $region18: #{last_layer_forward.1} parent=1 // pred_check
      _
    $region19: #{last_layer_forward.1} parent=1 // pred_check_branch
      %65 = sbr.rel (0) target = $region21
    $region20: #{last_layer_forward.1} parent=1 // pred_region
      %s67 = ssub.s32 16, 16
      %68 = vsyncadd [#allocation9], %s67
      %s70 = sshll.u32 [#allocation10], 4
      %s71 = int_to_ptr.vmem [resolvable:$true] %s70
      %73 = dma.hbm_to_vmem [thread:$0]  %s4, 16, %s71, [#allocation9]
    $region21: #{last_layer_forward.1} parent=1 // pred_fallthru
      _
    // Predicated region
    $region22: #{last_layer_forward.1} parent=1 // pred_check
      _
    $region23: #{last_layer_forward.1} parent=1 // pred_check_branch
      %75 = sbr.rel (0) target = $region25
    $region24: #{last_layer_forward.1} parent=1 // pred_region
      %s77 = ssub.s32 1024, 1024
      %78 = vsyncadd [#allocation12], %s77
      %s79 = sshll.u32 [#allocation11], 4
      %s80 = int_to_ptr.vmem [resolvable:$true] %s79
      %85 = dma.hbm_to_vmem [thread:$0]  %s5, 1024, %s80, [#allocation12], 128, 128, 8
    $region25: #{last_layer_forward.1} parent=1 // pred_fallthru
      _
    // Predicated region
    $region26: #{last_layer_forward.1} parent=1 // pred_check
      _
    $region27: #{last_layer_forward.1} parent=1 // pred_check_branch
      %87 = sbr.rel (0) target = $region29
    $region28: #{last_layer_forward.1} parent=1 // pred_region
      %s89 = ssub.s32 16, 16
      %90 = vsyncadd [#allocation12], %s89
      %s92 = sshll.u32 [#allocation13], 4
      %s93 = int_to_ptr.vmem [resolvable:$true] %s92
      %95 = dma.hbm_to_vmem [thread:$0]  %s6, 16, %s93, [#allocation12]
    $region29: #{last_layer_forward.1} parent=1 // pred_fallthru
      _
    // Predicated region
    $region30: #{last_layer_forward.1} parent=1 // pred_check
      _
    $region31: #{last_layer_forward.1} parent=1 // pred_check_branch
      %97 = sbr.rel (0) target = $region33
    $region32: #{last_layer_forward.1} parent=1 // pred_region
      %98 = dma.done [#allocation3], 128
    $region33: #{last_layer_forward.1} parent=1 // pred_fallthru
      _
    // Predicated region
    $region34: #{last_layer_forward.1} parent=1 // pred_check
      _
    $region35: #{last_layer_forward.1} parent=1 // pred_check_branch
      %100 = sbr.rel (0) target = $region37
    $region36: #{last_layer_forward.1} parent=1 // pred_region
      %101 = dma.done [#allocation6], 512
    $region37: #{last_layer_forward.1} parent=1 // pred_fallthru
      _
    // Predicated region
    $region38: #{last_layer_forward.1} parent=1 // pred_check
      _
    $region39: #{last_layer_forward.1} parent=1 // pred_check_branch
      %103 = sbr.rel (0) target = $region41
    $region40: #{last_layer_forward.1} parent=1 // pred_region
      %104 = dma.done [#allocation6], 16
    $region41: #{last_layer_forward.1} parent=1 // pred_fallthru
      _
    // Predicated region
    $region42: #{last_layer_forward.1} parent=1 // pred_check
      _
    $region43: #{last_layer_forward.1} parent=1 // pred_check_branch
      %106 = sbr.rel (0) target = $region45
    $region44: #{last_layer_forward.1} parent=1 // pred_region
      %107 = dma.done [#allocation9], 2048
    $region45: #{last_layer_forward.1} parent=1 // pred_fallthru
      _
    // Predicated region
    $region46: #{last_layer_forward.1} parent=1 // pred_check
      _
    $region47: #{last_layer_forward.1} parent=1 // pred_check_branch
      %109 = sbr.rel (0) target = $region49
    $region48: #{last_layer_forward.1} parent=1 // pred_region
      %110 = dma.done [#allocation9], 16
    $region49: #{last_layer_forward.1} parent=1 // pred_fallthru
      _
    // Predicated region
    $region50: #{last_layer_forward.1} parent=1 // pred_check
      _
    $region51: #{last_layer_forward.1} parent=1 // pred_check_branch
      %112 = sbr.rel (0) target = $region53
    $region52: #{last_layer_forward.1} parent=1 // pred_region
      %113 = dma.done [#allocation12], 1024
    $region53: #{last_layer_forward.1} parent=1 // pred_fallthru
      _
    // Predicated region
    $region54: #{last_layer_forward.1} parent=1 // pred_check
      _
    $region55: #{last_layer_forward.1} parent=1 // pred_check_branch
      %115 = sbr.rel (0) target = $region57
    $region56: #{last_layer_forward.1} parent=1 // pred_region
      %116 = dma.done [#allocation12], 16
    $region57: #{last_layer_forward.1} parent=1 // pred_fallthru
      _
    %v117 = vld [vmem:[#allocation2] sm:$0xff]
    %v118 = vld [vmem:[#allocation5] sm:$0xff]
    %v119 = vld [vmem:[#allocation5 + $0x8] sm:$0xff]
    %v120 = vld [vmem:[#allocation5 + $0x10] sm:$0xff]
    %v121 = vld [vmem:[#allocation5 + $0x18] sm:$0xff]
    %v122 = vld [vmem:[#allocation7] sm:$0x1]
    %v124 = vlaneseq
    %v125 = vshrl.u32 %v124, 7
    %v126 = vsub.s32 0, %v125
    %v127 = vrot.slane %v122, %v126
    %vm129 = vcmask 261120
    %v131 = vsel %vm129, %v117, 0
    %133 = vmatprep.subr.mxu0 0.0
    %134 = vmatpush1.msra.mxu0 %v118
    %135 = vmatprep.subr.mxu0 0.0
    %136 = vmatpush1.msra.mxu0 %v119
    %137 = vmatprep.subr.mxu0 0.0
    %138 = vmatpush1.msra.mxu0 %v120
    %139 = vmatprep.subr.mxu0 0.0
    %140 = vmatpush1.msra.mxu0 %v121
    %141 = vmatprep.subr.mxu0 0.0
    %142 = vmatpush1.msra.mxu0 0.0
    %143 = vmatprep.subr.mxu0 0.0
    %144 = vmatpush1.msra.mxu0 0.0
    %145 = vmatprep.subr.mxu0 0.0
    %146 = vmatpush1.msra.mxu0 0.0
    %147 = vmatprep.subr.mxu0 0.0
    %148 = vmatpush1.msra.mxu0 0.0
    %149 = vmatprep.subr.mxu0 0.0
    %150 = vmatpush1.msra.mxu0 0.0
    %151 = vmatprep.subr.mxu0 0.0
    %152 = vmatpush1.msra.mxu0 0.0
    %153 = vmatprep.subr.mxu0 0.0
    %154 = vmatpush1.msra.mxu0 0.0
    %155 = vmatprep.subr.mxu0 0.0
    %156 = vmatpush1.msra.mxu0 0.0
    %157 = vmatprep.subr.mxu0 0.0
    %158 = vmatpush1.msra.mxu0 0.0
    %159 = vmatprep.subr.mxu0 0.0
    %160 = vmatpush1.msra.mxu0 0.0
    %161 = vmatprep.subr.mxu0 0.0
    %162 = vmatpush1.msra.mxu0 0.0
    %163 = vmatprep.subr.mxu0 0.0
    %164 = vmatpush1.msra.mxu0 0.0
    %165 = vmatprep.subr.mxu0 0.0
    %166 = vmatpush1.msra.mxu0 0.0
    %167 = vmatprep.subr.mxu0 0.0
    %168 = vmatpush1.msra.mxu0 0.0
    %169 = vmatprep.subr.mxu0 0.0
    %170 = vmatpush1.msra.mxu0 0.0
    %171 = vmatprep.subr.mxu0 0.0
    %172 = vmatpush1.msra.mxu0 0.0
    %173 = vmatprep.subr.mxu0 0.0
    %174 = vmatpush1.msra.mxu0 0.0
    %175 = vmatprep.subr.mxu0 0.0
    %176 = vmatpush1.msra.mxu0 0.0
    %177 = vmatprep.subr.mxu0 0.0
    %178 = vmatpush1.msra.mxu0 0.0
    %179 = vmatprep.subr.mxu0 0.0
    %180 = vmatpush1.msra.mxu0 0.0
    %181 = vmatprep.subr.mxu0 0.0
    %182 = vmatpush1.msra.mxu0 0.0
    %183 = vmatprep.subr.mxu0 0.0
    %184 = vmatpush1.msra.mxu0 0.0
    %185 = vmatprep.subr.mxu0 0.0
    %186 = vmatpush1.msra.mxu0 0.0
    %187 = vmatprep.subr.mxu0 0.0
    %188 = vmatpush1.msra.mxu0 0.0
    %189 = vmatprep.subr.mxu0 0.0
    %190 = vmatpush1.msra.mxu0 0.0
    %191 = vmatprep.subr.mxu0 0.0
    %192 = vmatpush1.msra.mxu0 0.0
    %193 = vmatprep.subr.mxu0 0.0
    %194 = vmatpush1.msra.mxu0 0.0
    %195 = vmatprep.subr.mxu0 0.0
    %196 = vmatpush1.msra.mxu0 0.0
    %197 = vmatprep.mubr.f32.mxu0 0.0
    %198 = vmatmul.mubr.f32.gmra.mrb[0].mxu0 %v131
    %v199 = vpop.f32.mrb[0].mxu0
    %v200 = vadd.f32 %v127, %v199
    %v201 = vpop.f32.mrb[0].mxu0
    %202 = vdwg.mxu0
    %v203 = vmax.f32 %v200, 0.0
    %v204 = vld [vmem:[#allocation8] sm:$0xff]
    %v205 = vld [vmem:[#allocation8 + $0x8] sm:$0xff]
    %v206 = vld [vmem:[#allocation8 + $0x10] sm:$0xff]
    %v207 = vld [vmem:[#allocation8 + $0x18] sm:$0xff]
    %v208 = vld [vmem:[#allocation8 + $0x20] sm:$0xff]
    %v209 = vld [vmem:[#allocation8 + $0x28] sm:$0xff]
    %v210 = vld [vmem:[#allocation8 + $0x30] sm:$0xff]
    %v211 = vld [vmem:[#allocation8 + $0x38] sm:$0xff]
    %v212 = vld [vmem:[#allocation8 + $0x40] sm:$0xff]
    %v213 = vld [vmem:[#allocation8 + $0x48] sm:$0xff]
    %v214 = vld [vmem:[#allocation8 + $0x50] sm:$0xff]
    %v215 = vld [vmem:[#allocation8 + $0x58] sm:$0xff]
    %v216 = vld [vmem:[#allocation8 + $0x60] sm:$0xff]
    %v217 = vld [vmem:[#allocation8 + $0x68] sm:$0xff]
    %v218 = vld [vmem:[#allocation8 + $0x70] sm:$0xff]
    %v219 = vld [vmem:[#allocation8 + $0x78] sm:$0xff]
    %v220 = vld [vmem:[#allocation10] sm:$0x1]
    %v222 = vlaneseq
    %v223 = vshrl.u32 %v222, 7
    %v224 = vsub.s32 0, %v223
    %v225 = vrot.slane %v220, %v224
    %227 = vmatprep.subr.mxu0 0.0
    %228 = vmatpush1.msra.mxu0 %v204
    %229 = vmatprep.subr.mxu0 0.0
    %230 = vmatpush1.msra.mxu0 %v205
    %231 = vmatprep.subr.mxu0 0.0
    %232 = vmatpush1.msra.mxu0 %v206
    %233 = vmatprep.subr.mxu0 0.0
    %234 = vmatpush1.msra.mxu0 %v207
    %235 = vmatprep.subr.mxu0 0.0
    %236 = vmatpush1.msra.mxu0 %v208
    %237 = vmatprep.subr.mxu0 0.0
    %238 = vmatpush1.msra.mxu0 %v209
    %239 = vmatprep.subr.mxu0 0.0
    %240 = vmatpush1.msra.mxu0 %v210
    %241 = vmatprep.subr.mxu0 0.0
    %242 = vmatpush1.msra.mxu0 %v211
    %243 = vmatprep.subr.mxu0 0.0
    %244 = vmatpush1.msra.mxu0 %v212
    %245 = vmatprep.subr.mxu0 0.0
    %246 = vmatpush1.msra.mxu0 %v213
    %247 = vmatprep.subr.mxu0 0.0
    %248 = vmatpush1.msra.mxu0 %v214
    %249 = vmatprep.subr.mxu0 0.0
    %250 = vmatpush1.msra.mxu0 %v215
    %251 = vmatprep.subr.mxu0 0.0
    %252 = vmatpush1.msra.mxu0 %v216
    %253 = vmatprep.subr.mxu0 0.0
    %254 = vmatpush1.msra.mxu0 %v217
    %255 = vmatprep.subr.mxu0 0.0
    %256 = vmatpush1.msra.mxu0 %v218
    %257 = vmatprep.subr.mxu0 0.0
    %258 = vmatpush1.msra.mxu0 %v219
    %259 = vmatprep.subr.mxu0 0.0
    %260 = vmatpush1.msra.mxu0 0.0
    %261 = vmatprep.subr.mxu0 0.0
    %262 = vmatpush1.msra.mxu0 0.0
    %263 = vmatprep.subr.mxu0 0.0
    %264 = vmatpush1.msra.mxu0 0.0
    %265 = vmatprep.subr.mxu0 0.0
    %266 = vmatpush1.msra.mxu0 0.0
    %267 = vmatprep.subr.mxu0 0.0
    %268 = vmatpush1.msra.mxu0 0.0
    %269 = vmatprep.subr.mxu0 0.0
    %270 = vmatpush1.msra.mxu0 0.0
    %271 = vmatprep.subr.mxu0 0.0
    %272 = vmatpush1.msra.mxu0 0.0
    %273 = vmatprep.subr.mxu0 0.0
    %274 = vmatpush1.msra.mxu0 0.0
    %275 = vmatprep.subr.mxu0 0.0
    %276 = vmatpush1.msra.mxu0 0.0
    %277 = vmatprep.subr.mxu0 0.0
    %278 = vmatpush1.msra.mxu0 0.0
    %279 = vmatprep.subr.mxu0 0.0
    %280 = vmatpush1.msra.mxu0 0.0
    %281 = vmatprep.subr.mxu0 0.0
    %282 = vmatpush1.msra.mxu0 0.0
    %283 = vmatprep.subr.mxu0 0.0
    %284 = vmatpush1.msra.mxu0 0.0
    %285 = vmatprep.subr.mxu0 0.0
    %286 = vmatpush1.msra.mxu0 0.0
    %287 = vmatprep.subr.mxu0 0.0
    %288 = vmatpush1.msra.mxu0 0.0
    %289 = vmatprep.subr.mxu0 0.0
    %290 = vmatpush1.msra.mxu0 0.0
    %291 = vmatprep.mubr.f32.mxu0 0.0
    %292 = vmatmul.mubr.f32.gmra.mrb[0].mxu0 %v203
    %v293 = vpop.f32.mrb[0].mxu0
    %v294 = vadd.f32 %v225, %v293
    %v295 = vpop.f32.mrb[0].mxu0
    %296 = vdwg.mxu0
    %v297 = vmax.f32 %v294, 0.0
    %vm298 = vcmask 523264
    %299 = vst.msk [vmem:[#allocation15] sm:$0xff] %vm298, %v297
    %v300 = vld [vmem:[#allocation11] sm:$0xff]
    %v301 = vld [vmem:[#allocation11 + $0x8] sm:$0xff]
    %v302 = vld [vmem:[#allocation11 + $0x10] sm:$0xff]
    %v303 = vld [vmem:[#allocation11 + $0x18] sm:$0xff]
    %v304 = vld [vmem:[#allocation11 + $0x20] sm:$0xff]
    %v305 = vld [vmem:[#allocation11 + $0x28] sm:$0xff]
    %v306 = vld [vmem:[#allocation11 + $0x30] sm:$0xff]
    %v307 = vld [vmem:[#allocation11 + $0x38] sm:$0xff]
    %v308 = vld [vmem:[#allocation13] sm:$0x1]
    %v310 = vlaneseq
    %v311 = vshrl.u32 %v310, 7
    %v312 = vsub.s32 0, %v311
    %v313 = vrot.slane %v308, %v312
    %v316 = vsel %vm298, %v297, 0
    %318 = vmatprep.subr.mxu0 0.0
    %319 = vmatpush1.msra.mxu0 %v300
    %320 = vmatprep.subr.mxu0 0.0
    %321 = vmatpush1.msra.mxu0 %v301
    %322 = vmatprep.subr.mxu0 0.0
    %323 = vmatpush1.msra.mxu0 %v302
    %324 = vmatprep.subr.mxu0 0.0
    %325 = vmatpush1.msra.mxu0 %v303
    %326 = vmatprep.subr.mxu0 0.0
    %327 = vmatpush1.msra.mxu0 %v304
    %328 = vmatprep.subr.mxu0 0.0
    %329 = vmatpush1.msra.mxu0 %v305
    %330 = vmatprep.subr.mxu0 0.0
    %331 = vmatpush1.msra.mxu0 %v306
    %332 = vmatprep.subr.mxu0 0.0
    %333 = vmatpush1.msra.mxu0 %v307
    %334 = vmatprep.subr.mxu0 0.0
    %335 = vmatpush1.msra.mxu0 0.0
    %336 = vmatprep.subr.mxu0 0.0
    %337 = vmatpush1.msra.mxu0 0.0
    %338 = vmatprep.subr.mxu0 0.0
    %339 = vmatpush1.msra.mxu0 0.0
    %340 = vmatprep.subr.mxu0 0.0
    %341 = vmatpush1.msra.mxu0 0.0
    %342 = vmatprep.subr.mxu0 0.0
    %343 = vmatpush1.msra.mxu0 0.0
    %344 = vmatprep.subr.mxu0 0.0
    %345 = vmatpush1.msra.mxu0 0.0
    %346 = vmatprep.subr.mxu0 0.0
    %347 = vmatpush1.msra.mxu0 0.0
    %348 = vmatprep.subr.mxu0 0.0
    %349 = vmatpush1.msra.mxu0 0.0
    %350 = vmatprep.subr.mxu0 0.0
    %351 = vmatpush1.msra.mxu0 0.0
    %352 = vmatprep.subr.mxu0 0.0
    %353 = vmatpush1.msra.mxu0 0.0
    %354 = vmatprep.subr.mxu0 0.0
    %355 = vmatpush1.msra.mxu0 0.0
    %356 = vmatprep.subr.mxu0 0.0
    %357 = vmatpush1.msra.mxu0 0.0
    %358 = vmatprep.subr.mxu0 0.0
    %359 = vmatpush1.msra.mxu0 0.0
    %360 = vmatprep.subr.mxu0 0.0
    %361 = vmatpush1.msra.mxu0 0.0
    %362 = vmatprep.subr.mxu0 0.0
    %363 = vmatpush1.msra.mxu0 0.0
    %364 = vmatprep.subr.mxu0 0.0
    %365 = vmatpush1.msra.mxu0 0.0
    %366 = vmatprep.subr.mxu0 0.0
    %367 = vmatpush1.msra.mxu0 0.0
    %368 = vmatprep.subr.mxu0 0.0
    %369 = vmatpush1.msra.mxu0 0.0
    %370 = vmatprep.subr.mxu0 0.0
    %371 = vmatpush1.msra.mxu0 0.0
    %372 = vmatprep.subr.mxu0 0.0
    %373 = vmatpush1.msra.mxu0 0.0
    %374 = vmatprep.subr.mxu0 0.0
    %375 = vmatpush1.msra.mxu0 0.0
    %376 = vmatprep.subr.mxu0 0.0
    %377 = vmatpush1.msra.mxu0 0.0
    %378 = vmatprep.subr.mxu0 0.0
    %379 = vmatpush1.msra.mxu0 0.0
    %380 = vmatprep.subr.mxu0 0.0
    %381 = vmatpush1.msra.mxu0 0.0
    %382 = vmatprep.mubr.f32.mxu0 0.0
    %383 = vmatmul.mubr.f32.gmra.mrb[0].mxu0 %v316
    %v384 = vpop.f32.mrb[0].mxu0
    %v385 = vadd.f32 %v313, %v384
    %v386 = vpop.f32.mrb[0].mxu0
    %387 = vdwg.mxu0
    %vm388 = vcmask 80896
    %389 = vst.msk [vmem:[#allocation14] sm:$0xff] %vm388, %v385
    // Predicated region
    $region58: #{last_layer_forward.1} parent=1 // pred_check
      _
    $region59: #{last_layer_forward.1} parent=1 // pred_check_branch
      %391 = sbr.rel (0) target = $region61
    $region60: #{last_layer_forward.1} parent=1 // pred_region
      %s393 = ssub.s32 128, 128
      %394 = vsyncadd [#allocation4], %s393
      %s396 = sshll.u32 [#allocation14], 4
      %s397 = int_to_ptr.vmem [resolvable:$true] %s396
      %399 = dma.vmem_to_hbm [thread:$0]  %s397, 128, %s7, [#allocation4]
    $region61: #{last_layer_forward.1} parent=1 // pred_fallthru
      _
    // Predicated region
    $region62: #{last_layer_forward.1} parent=1 // pred_check
      _
    $region63: #{last_layer_forward.1} parent=1 // pred_check_branch
      %401 = sbr.rel (0) target = $region65
    $region64: #{last_layer_forward.1} parent=1 // pred_region
      %s403 = ssub.s32 128, 128
      %404 = vsyncadd [#allocation16], %s403
      %s406 = sshll.u32 [#allocation15], 4
      %s407 = int_to_ptr.vmem [resolvable:$true] %s406
      %409 = dma.vmem_to_hbm [thread:$0]  %s407, 128, %s8, [#allocation16]
    $region65: #{last_layer_forward.1} parent=1 // pred_fallthru
      _
    // Predicated region
    $region66: #{last_layer_forward.1} parent=1 // pred_check
      _
    $region67: #{last_layer_forward.1} parent=1 // pred_check_branch
      %411 = sbr.rel (0) target = $region69
    $region68: #{last_layer_forward.1} parent=1 // pred_region
      %412 = dma.done [#allocation4], 128
    $region69: #{last_layer_forward.1} parent=1 // pred_fallthru
      _
    // Predicated region
    $region70: #{last_layer_forward.1} parent=1 // pred_check
      _
    $region71: #{last_layer_forward.1} parent=1 // pred_check_branch
      %414 = sbr.rel (0) target = $region73
    $region72: #{last_layer_forward.1} parent=1 // pred_region
      %415 = dma.done [#allocation16], 128
    $region73: #{last_layer_forward.1} parent=1 // pred_fallthru
      _
    %416 = vsyncpa [#allocation3], 1
    %417 = vsyncpa [#allocation6], 1
    %418 = vsyncpa [#allocation9], 1
    %419 = vsyncpa [#allocation12], 1
    %420 = vsyncpa [#allocation4], 1
    %421 = vsyncpa [#allocation16], 1

</llo_original>
